<compile_context>
chip_gen: v5e
topology: v5e:2x2
jax: 0.10.0
libtpu: 0.0.40
codegen_flags: <defaults>
</compile_context>

<pallas_src>
import jax
import jax.numpy as jnp
from jax.experimental import pallas as pl
from jax.experimental.pallas import tpu as pltpu


def _encoder_kernel(x_ref, w_ref, b_ref, o_ref):
    # x_ref: (tm, din)  w_ref: (din, hidden)  b_ref: (1, hidden)  o_ref: (tm, hidden)
    y = jnp.dot(x_ref[...], w_ref[...], preferred_element_type=jnp.float32)
    y = y + b_ref[...]                                  # f32 bias-add (v5e-safe)
    o_ref[...] = jnp.maximum(y, 0.0).astype(o_ref.dtype)


_MAX_SINGLE_BLOCK = 512  # above this, tile so v7x's 2 TCs + pipelining engage
_TILE_CANDS = tuple(range(2048, 511, -256))  # 2048, 1792, ..., 768, 512


def _pick_tile_m(m):
    """Row-tile choice (HBM-roofline driven):
       1. m <= 512           -> one full block (no per-step overhead).
       2. tile in [512,2048] dividing m exactly with an EVEN grid >= 2
          (balanced across v7x's two TensorCores), largest first.
       3. tile dividing m exactly with grid >= 2, largest first.
       4. tile giving an even grid >= 2 (ragged last block handled by Pallas
          masked partial writes), smallest first for better balance.
       5. 512 (ragged last block).
    """
    if m <= _MAX_SINGLE_BLOCK:
        return m
    for t in _TILE_CANDS:
        g = pl.cdiv(m, t)
        if m % t == 0 and g >= 2 and g % 2 == 0:
            return t
    for t in _TILE_CANDS:
        if m % t == 0 and m // t >= 2:
            return t
    for t in reversed(_TILE_CANDS):
        g = pl.cdiv(m, t)
        if g >= 2 and g % 2 == 0:
            return t
    return 512


def encoder_forward(x, weight, bias, *, out_dtype=None):
    """relu(x @ weight.T + bias).

    x: (..., din), weight: (hidden, din) [PyTorch layout], bias: (hidden,).
    out_dtype: output storage dtype; default x.dtype (module semantics).
      Passing jnp.bfloat16 halves the dominant HBM-traffic term (the output)
      while matmul / bias / relu still accumulate in f32.
    """
    din = x.shape[-1]
    hidden = weight.shape[0]
    lead_shape = x.shape[:-1]
    out_dtype = x.dtype if out_dtype is None else jnp.dtype(out_dtype)

    x2d = x.reshape(-1, din)
    m = x2d.shape[0]
    tile_m = _pick_tile_m(m)
    grid = (pl.cdiv(m, tile_m),)

    # One-time, tiny (din*hidden = 16 KiB) weight transpose; match x's dtype
    # so a bf16 producer gets a bf16 matmul without any extra pass over x.
    w_t = weight.T.astype(x2d.dtype)                    # (din, hidden)
    b2d = bias.reshape(1, hidden).astype(jnp.float32)   # (1, hidden), f32

    in_elem = jnp.dtype(x2d.dtype).itemsize
    out_elem = jnp.dtype(out_dtype).itemsize
    cost = pl.CostEstimate(
        flops=2 * m * din * hidden,
        transcendentals=0,
        bytes_accessed=(m * din * in_elem            # x
                        + din * hidden * in_elem     # W (fetched once)
                        + hidden * 4                 # bias
                        + m * hidden * out_elem),    # output (dominant term)
    )

    out = pl.pallas_call(
        _encoder_kernel,
        out_shape=jax.ShapeDtypeStruct((m, hidden), out_dtype),
        grid_spec=pltpu.PrefetchScalarGridSpec(
            num_scalar_prefetch=0,
            grid=grid,
            in_specs=[
                pl.BlockSpec((tile_m, din), lambda i: (i, 0)),   # x tile / step
                # Constant block indices -> Pallas does NOT re-DMA these per
                # grid step; they stay resident in VMEM.
                pl.BlockSpec((din, hidden), lambda i: (0, 0)),   # weight
                pl.BlockSpec((1, hidden), lambda i: (0, 0)),     # bias
            ],
            out_specs=pl.BlockSpec((tile_m, hidden), lambda i: (i, 0)),
        ),
        compiler_params=pltpu.CompilerParams(
            dimension_semantics=("parallel",),      # megacore split on v7x
        ),
        cost_estimate=cost,
    )(x2d, w_t, b2d)

    return out.reshape(*lead_shape, hidden)


def init_encoder_params(key, din=32, hidden_dim=128):
    # Deterministic init mimicking nn.Linear's uniform(-1/sqrt(din), 1/sqrt(din)).
    kw, kb = jax.random.split(key)
    bound = 1.0 / jnp.sqrt(jnp.float32(din))
    weight = jax.random.uniform(kw, (hidden_dim, din), jnp.float32, -bound, bound)
    bias = jax.random.uniform(kb, (hidden_dim,), jnp.float32, -bound, bound)
    return weight, bias


if __name__ == "__main__":
    key = jax.random.PRNGKey(0)
    k_x, k_p, k_x2, k_x3 = jax.random.split(key, 4)

    din, hidden_dim = 32, 128
    weight, bias = init_encoder_params(k_p, din, hidden_dim)

    # DGN-like small shape (batch, n_agents, din): M = 16 -> single full block.
    batch, n_agents = 2, 8
    x = jax.random.normal(k_x, (batch, n_agents, din), jnp.float32)
    out = jax.block_until_ready(encoder_forward(x, weight, bias))
    ref = jnp.maximum(jnp.einsum("bnd,hd->bnh", x, weight) + bias, 0.0)
    assert out.shape == (batch, n_agents, hidden_dim)
    assert out.dtype == jnp.float32
    assert jnp.allclose(out, ref, atol=1e-5, rtol=1e-5)

    # Multi-tile path: M = 2560 -> tile_m = 1280, grid = 2 (even + exactly
    # balanced across v7x's two TensorCores, no pad, no output-slice copy).
    x_big = jax.random.normal(k_x2, (4, 640, din), jnp.float32)
    out_big = jax.block_until_ready(encoder_forward(x_big, weight, bias))
    ref_big = jnp.maximum(jnp.einsum("bnd,hd->bnh", x_big, weight) + bias, 0.0)
    assert jnp.allclose(out_big, ref_big, atol=1e-4, rtol=1e-4)

    # Ragged-grid path: M = 1000 -> even grid of 2 with a partial last block
    # (Pallas masked write, no jnp.pad and no out[:m] copy).
    x_rag = jax.random.normal(k_x3, (1000, din), jnp.float32)
    out_rag = jax.block_until_ready(encoder_forward(x_rag, weight, bias))
    ref_rag = jnp.maximum(x_rag @ weight.T + bias, 0.0)
    assert out_rag.shape == (1000, hidden_dim)
    assert jnp.allclose(out_rag, ref_rag, atol=1e-4, rtol=1e-4)

    # bf16-output option: halves the dominant HBM term (output ~= 80% of the
    # bytes moved); matmul / bias / relu still accumulate in f32.
    out_bf16 = jax.block_until_ready(
        encoder_forward(x_big, weight, bias, out_dtype=jnp.bfloat16))
    assert out_bf16.dtype == jnp.bfloat16
    assert jnp.allclose(out_bf16.astype(jnp.float32), ref_big,
                        atol=5e-2, rtol=5e-2)

    print("KERNEL_OK")
</pallas_src>

<mosaic_0001>
module attributes {stable_mosaic.version = 11 : i64} {
  func.func @_encoder_kernel(%arg0: i32, %arg1: memref<16x32xf32, #tpu.memory_space<vmem>>, %arg2: memref<32x128xf32, #tpu.memory_space<vmem>>, %arg3: memref<1x128xf32, #tpu.memory_space<vmem>>, %arg4: memref<16x128xf32, #tpu.memory_space<vmem>>) attributes {dimension_semantics = [#tpu.dimension_semantics<parallel>], iteration_bounds = array<i64: 1>, scalar_prefetch = 0 : i64, scratch_operands = 0 : i64, tpu.core_type = #tpu.core_type<tc>, window_params = [{transform_indices = @transform_0, window_bounds = array<i64: 16, 32>}, {pipeline_mode = #tpu.pipeline_mode<synchronous>, transform_indices = @transform_1, window_bounds = array<i64: 32, 128>}, {pipeline_mode = #tpu.pipeline_mode<synchronous>, transform_indices = @transform_2, window_bounds = array<i64: 1, 128>}, {transform_indices = @transform_3, window_bounds = array<i64: 16, 128>}]} {
    %c0 = arith.constant 0 : index
    %c0_0 = arith.constant 0 : index
    %0 = vector.load %arg1[%c0, %c0_0] : memref<16x32xf32, #tpu.memory_space<vmem>>, vector<16x32xf32>
    %c0_1 = arith.constant 0 : index
    %c0_2 = arith.constant 0 : index
    %1 = vector.load %arg2[%c0_1, %c0_2] : memref<32x128xf32, #tpu.memory_space<vmem>>, vector<32x128xf32>
    %cst = arith.constant dense<0.000000e+00> : vector<16x128xf32>
    %2 = tpu.matmul %0, %1, %cst {dimension_numbers = #tpu.dot_dimension_numbers<[1], [0], [0], [1], [0, 0, 1, 1], [], []>} : vector<16x32xf32>, vector<32x128xf32>, vector<16x128xf32> -> vector<16x128xf32>
    %c0_3 = arith.constant 0 : index
    %c0_4 = arith.constant 0 : index
    %3 = vector.load %arg3[%c0_3, %c0_4] : memref<1x128xf32, #tpu.memory_space<vmem>>, vector<1x128xf32>
    %4 = vector.broadcast %3 : vector<1x128xf32> to vector<16x128xf32>
    %5 = arith.addf %2, %4 : vector<16x128xf32>
    %cst_5 = arith.constant 0.000000e+00 : f32
    %6 = vector.broadcast %cst_5 : f32 to vector<16x128xf32>
    %7 = arith.maximumf %5, %6 : vector<16x128xf32>
    %c0_6 = arith.constant 0 : index
    %c0_7 = arith.constant 0 : index
    %8 = vector.load %arg4[%c0_6, %c0_7] : memref<16x128xf32, #tpu.memory_space<vmem>>, vector<16x128xf32>
    tpu.vector_store %arg4[%c0_6, %c0_7], %7 {strides = array<i32>} : memref<16x128xf32, #tpu.memory_space<vmem>>, vector<16x128xf32>,
    return
  }
  func.func @transform_0(%arg0: i32) -> (i32, i32) {
    %c0_i32 = arith.constant 0 : i32
    %c0_i32_0 = arith.constant 0 : i32
    return %arg0, %c0_i32 : i32, i32
  }
  func.func @transform_1(%arg0: i32) -> (i32, i32) {
    %c0_i32 = arith.constant 0 : i32
    %c0_i32_0 = arith.constant 0 : i32
    %c0_i32_1 = arith.constant 0 : i32
    return %c0_i32, %c0_i32_0 : i32, i32
  }
  func.func @transform_2(%arg0: i32) -> (i32, i32) {
    %c0_i32 = arith.constant 0 : i32
    %c0_i32_0 = arith.constant 0 : i32
    %c0_i32_1 = arith.constant 0 : i32
    return %c0_i32, %c0_i32_0 : i32, i32
  }
  func.func @transform_3(%arg0: i32) -> (i32, i32) {
    %c0_i32 = arith.constant 0 : i32
    %c0_i32_0 = arith.constant 0 : i32
    return %arg0, %c0_i32 : i32, i32
  }
}

</mosaic_0001>

<llo_original>
// kernel: tpu_custom_call.1
$region0: #{tpu_custom_call.1}
  #allocation0 [shape = 'u32[]', space=smem, size = 0x4, offset = 0x4, fixed_abs, tag = 'smem constant byte address 0x4 - core index']
  #allocation1 [shape = 'u32[72,128]{1,0:T(1,128)}', space=vmem, size = 0x9000, scoped, tag = 'internal scratch']
  %s0 = inlined_call_operand.hbm [shape: f32[16,32], index: 0, kind: input, shape index: {}]
  %s1 = inlined_call_operand.hbm [shape: f32[32,128], index: 1, kind: input, shape index: {}]
  %s2 = inlined_call_operand.vmem [shape: f32[1,128], index: 2, kind: input, shape index: {}]
  %s3 = inlined_call_operand.hbm [shape: f32[16,128], index: 3, kind: output, shape index: {}]
  %s4 = sld [smem:[#allocation0]]
  $region30: #{tpu_custom_call.1} parent=0
    _
  %s6 = ssub.s32 1, %s4
  %s7 = scalar_select 0, %s6, %s4
  $region1: #{tpu_custom_call.1} parent=0
    #allocation2 [shape = 'u8[8192]{0}', space=vmem, size = 0x2000, scoped, tag = 'input window, operand 0, single buffered']
    #allocation3 [shape = 's32[1]{0}', space=sflag, size = 0x4, scoped, tag = 'scoped memory for tpu_custom_call.1']
    #allocation4 [shape = 's32[1]{0}', space=sflag, size = 0x4, scoped, tag = 'scoped memory for tpu_custom_call.1']
    #allocation5 [shape = 'u8[16384]{0}', space=vmem, size = 0x4000, scoped, tag = 'input window, operand 1, single buffered']
    #allocation6 [shape = 's32[1]{0}', space=sflag, size = 0x4, scoped, tag = 'scoped memory for tpu_custom_call.1']
    #allocation7 [shape = 'u8[8192]{0}', space=vmem, size = 0x2000, scoped, tag = 'output window, operand 0, single buffered']
    %8 = vsyncpa [#allocation3], 0
    %9 = vsyncpa [#allocation6], 0
    %10 = vsyncpa [#allocation4], 0
    // Predicated region
    $region2: #{tpu_custom_call.1} parent=1 // pred_check
      _
    $region3: #{tpu_custom_call.1} parent=1 // pred_check_branch
      %12 = sbr.rel (0) target = $region5
    $region4: #{tpu_custom_call.1} parent=1 // pred_region
      %14 = vsyncadd [#allocation3], 0
      %s15 = sshll.u32 %s0, 4
      %s16 = int_to_ptr.hbm [resolvable:$true] %s15
      %s17 = sshll.u32 [#allocation2], 4
      %s18 = int_to_ptr.vmem [resolvable:$true] %s17
      %23 = dma.hbm_to_vmem [thread:$0]  %s16, 256, %s18, [#allocation3], 128, 128, 8
    $region5: #{tpu_custom_call.1} parent=1 // pred_fallthru
      _
    // Predicated region
    $region6: #{tpu_custom_call.1} parent=1 // pred_check
      _
    $region7: #{tpu_custom_call.1} parent=1 // pred_check_branch
      %25 = sbr.rel (0) target = $region9
    $region8: #{tpu_custom_call.1} parent=1 // pred_region
      %27 = vsyncadd [#allocation6], 0
      %s28 = sshll.u32 %s1, 4
      %s29 = int_to_ptr.hbm [resolvable:$true] %s28
      %s30 = sshll.u32 [#allocation5], 4
      %s31 = int_to_ptr.vmem [resolvable:$true] %s30
      %36 = dma.hbm_to_vmem [thread:$0]  %s29, 512, %s31, [#allocation6], 128, 128, 8
    $region9: #{tpu_custom_call.1} parent=1 // pred_fallthru
      _
    // Predicated region
    $region10: #{tpu_custom_call.1} parent=1 // pred_check
      _
    $region11: #{tpu_custom_call.1} parent=1 // pred_check_branch
      %38 = sbr.rel (0) target = $region13
    $region12: #{tpu_custom_call.1} parent=1 // pred_region
      _
    $region13: #{tpu_custom_call.1} parent=1 // pred_fallthru
      _
    // Predicated region
    $region14: #{tpu_custom_call.1} parent=1 // pred_check
      _
    $region15: #{tpu_custom_call.1} parent=1 // pred_check_branch
      %40 = sbr.rel (0) target = $region17
    $region16: #{tpu_custom_call.1} parent=1 // pred_region
      %42 = dma.done [#allocation3], 256
    $region17: #{tpu_custom_call.1} parent=1 // pred_fallthru
      _
    // Predicated region
    $region18: #{tpu_custom_call.1} parent=1 // pred_check
      _
    $region19: #{tpu_custom_call.1} parent=1 // pred_check_branch
      %44 = sbr.rel (0) target = $region21
    $region20: #{tpu_custom_call.1} parent=1 // pred_region
      %46 = dma.done [#allocation6], 512
    $region21: #{tpu_custom_call.1} parent=1 // pred_fallthru
      _
    %v47 = vld [vmem:[#allocation2] sm:$0xff]
    %v48 = vld [vmem:[#allocation2 + $0x8] sm:$0xff]
    %v49 = vld [vmem:[#allocation5] sm:$0xff]
    %v50 = vld [vmem:[#allocation5 + $0x8] sm:$0xff]
    %v51 = vld [vmem:[#allocation5 + $0x10] sm:$0xff]
    %v52 = vld [vmem:[#allocation5 + $0x18] sm:$0xff]
    %v53 = vld [vmem:[%s2] sm:$0x1]
    %v55 = vperm.slane %v53, 0
    %vm57 = vcmask 261120
    %v59 = vsel %vm57, %v47, 0
    %v62 = vsel %vm57, %v48, 0
    %64 = vmatpush.msra.mxu0 0.0
    %65 = vmatpush.msra.mxu0 0.0
    %66 = vmatpush.msra.mxu0 0.0
    %67 = vmatpush.msra.mxu0 0.0
    %68 = vmatpush.msra.mxu0 0.0
    %69 = vmatpush.msra.mxu0 0.0
    %70 = vmatpush.msra.mxu0 0.0
    %71 = vmatpush.msra.mxu0 0.0
    %72 = vmatpush.msra.mxu0 0.0
    %73 = vmatpush.msra.mxu0 0.0
    %74 = vmatpush.msra.mxu0 0.0
    %75 = vmatpush.msra.mxu0 0.0
    %76 = vmatpush.msra.mxu0 %v52
    %77 = vmatpush.msra.mxu0 %v51
    %78 = vmatpush.msra.mxu0 %v50
    %79 = vmatpush.msra.mxu0 %v49
    %80 = vmatmul.f32.gmra.mxu0 %v59
    %v81 = vpop.f32.mrf.mxu0
    %v82 = vadd.f32 %v55, %v81
    %83 = vmatmul.f32.gmra.mxu0 %v62
    %v84 = vpop.f32.mrf.mxu0
    %v85 = vadd.f32 %v55, %v84
    %86 = vdwg.mxu0
    %v87 = vmax.f32 %v82, 0.0
    %v88 = vmax.f32 %v85, 0.0
    %89 = vst [vmem:[#allocation7] sm:$0xff] %v87
    %90 = vst [vmem:[#allocation7 + $0x8] sm:$0xff] %v88
    // Predicated region
    $region22: #{tpu_custom_call.1} parent=1 // pred_check
      _
    $region23: #{tpu_custom_call.1} parent=1 // pred_check_branch
      %92 = sbr.rel (0) target = $region25
    $region24: #{tpu_custom_call.1} parent=1 // pred_region
      %94 = vsyncadd [#allocation4], 0
      %s95 = sshll.u32 [#allocation7], 4
      %s96 = int_to_ptr.vmem [resolvable:$true] %s95
      %s97 = sshll.u32 %s3, 4
      %s98 = int_to_ptr.hbm [resolvable:$true] %s97
      %103 = dma.vmem_to_hbm [thread:$0]  %s96, 256, %s98, [#allocation4], 128, 128, 8
    $region25: #{tpu_custom_call.1} parent=1 // pred_fallthru
      _
    // Predicated region
    $region26: #{tpu_custom_call.1} parent=1 // pred_check
      _
    $region27: #{tpu_custom_call.1} parent=1 // pred_check_branch
      %105 = sbr.rel (0) target = $region29
    $region28: #{tpu_custom_call.1} parent=1 // pred_region
      %107 = dma.done [#allocation4], 256
    $region29: #{tpu_custom_call.1} parent=1 // pred_fallthru
      _
    %108 = vsyncpa [#allocation3], 1
    %109 = vsyncpa [#allocation6], 1
    %110 = vsyncpa [#allocation4], 1

</llo_original>
